<compile_context>
chip_gen: v5e
topology: v5e:2x2
jax: 0.10.0
libtpu: 0.0.40
codegen_flags: <defaults>
</compile_context>

<pallas_src>
import functools

import jax
import jax.numpy as jnp
import numpy as np
from jax.experimental import pallas as pl
from jax.experimental.pallas import tpu as pltpu


def conv_bn_leaky_kernel(x_ref, w_ref, bias_ref, o_ref, *, Ho, stride, leaky_slope):
    """Single grid step; the whole (small) problem is resident in VMEM.

    x_ref    : (N, Hp, Wp*Cin)        zero-padded, lane-flattened input (bf16)
    w_ref    : (KH, Wp*Cin, Wo*Cout)  block-Toeplitz weights, BN scale folded in (bf16)
    bias_ref : (1, Wo*Cout)           folded BN bias tiled across Wo (f32)
    o_ref    : (N*Ho, Wo*Cout)        lane-dense output (bf16)
    """
    N, Hp, WpCin = x_ref.shape
    KH = w_ref.shape[0]

    x = x_ref[...]  # load once: (N, Hp, Wp*Cin)

    acc = None
    for kh in range(KH):  # static unroll (KH == 3)
        # Row window for kernel-row kh of every image, stacked along sublanes so the
        # batch rides in the matmul M dimension. With stride=1 these are plain
        # offset slices (no strided/gather relayout).
        parts = [
            jax.lax.slice(
                x,
                (n, kh, 0),
                (n + 1, kh + stride * (Ho - 1) + 1, WpCin),
                (1, stride, 1),
            ).reshape(Ho, WpCin)
            for n in range(N)
        ]
        lhs = parts[0] if N == 1 else jnp.concatenate(parts, axis=0)  # (N*Ho, Wp*Cin)

        # MXU matmul, bf16 operands, f32 accumulation. The kw/ci reduction is inside
        # the block-Toeplitz weight, so the output lands directly lane-dense.
        contrib = jnp.dot(lhs, w_ref[kh], preferred_element_type=jnp.float32)
        acc = contrib if acc is None else acc + contrib

    # Lane-dense epilogue: full 128-lane vregs for bias + LeakyReLU, unmasked stores.
    y = acc + bias_ref[...]
    o_ref[...] = jnp.where(y > 0, y, leaky_slope * y).astype(o_ref.dtype)


def conv2d_batch_leaky(x_nchw, weight_oihw, gamma, beta, running_mean, running_var,
                       *, stride=1, leaky_slope=0.1, eps=1e-5):
    """PyTorch-equivalent forward: Conv2d(bias=False) -> BatchNorm2d(eval) -> LeakyReLU."""
    N, Cin, H, W = x_nchw.shape
    Cout, _, KH, KW = weight_oihw.shape
    pad_h, pad_w = KH // 2, KW // 2                    # int(kernel_size / 2)
    Ho = (H + 2 * pad_h - KH) // stride + 1
    Wo = (W + 2 * pad_w - KW) // stride + 1

    # NCHW -> NHWC, bf16, zero-pad spatially, then flatten (Wp, Cin) into one
    # lane-dense minor dim (Wp*Cin) so the kernel never sees a 4-lane axis.
    x = jnp.transpose(x_nchw, (0, 2, 3, 1)).astype(jnp.bfloat16)
    xp = jnp.pad(x, ((0, 0), (pad_h, pad_h), (pad_w, pad_w), (0, 0)))
    Hp, Wp = xp.shape[1], xp.shape[2]
    xp = xp.reshape(N, Hp, Wp * Cin)

    # Fold BN (inference) into per-channel scale/bias; fold the scale into the weights.
    scale = gamma / jnp.sqrt(running_var + eps)
    bias = (beta - running_mean * scale).astype(jnp.float32)
    w_hwio = (jnp.transpose(weight_oihw, (2, 3, 1, 0)).astype(jnp.float32)
              * scale[None, None, None, :])                      # (KH, KW, Cin, Cout)

    # Block-Toeplitz weight: W_full[kh, wp*Cin+ci, wo*Cout+co] = w[kh, wp-wo*stride, ci, co].
    # Folds the horizontal (kw) and channel (ci) reductions into the matmul K dim so the
    # kernel output is directly (rows, Wo*Cout) lane-dense with zero in-kernel relayouts.
    onehot = (jnp.arange(Wp)[None, :, None]
              == (jnp.arange(Wo)[None, None, :] * stride
                  + jnp.arange(KW)[:, None, None])).astype(jnp.float32)   # (KW, Wp, Wo)
    W_full = jnp.einsum('kpw,hkio->hpiwo', onehot, w_hwio)
    W_full = W_full.reshape(KH, Wp * Cin, Wo * Cout).astype(jnp.bfloat16)

    # Bias tiled across Wo so the epilogue broadcast is lane-dense.
    bias_tiled = jnp.tile(bias, (Wo,)).reshape(1, Wo * Cout)

    kernel = functools.partial(conv_bn_leaky_kernel,
                               Ho=Ho, stride=stride, leaky_slope=leaky_slope)

    out = pl.pallas_call(
        kernel,
        out_shape=jax.ShapeDtypeStruct((N * Ho, Wo * Cout), jnp.bfloat16),
        grid_spec=pltpu.PrefetchScalarGridSpec(
            num_scalar_prefetch=0,
            grid=(1,),   # batch is folded into the matmul M; no per-image grid overhead
            in_specs=[
                pl.BlockSpec((N, Hp, Wp * Cin), lambda i: (0, 0, 0)),
                pl.BlockSpec((KH, Wp * Cin, Wo * Cout), lambda i: (0, 0, 0)),
                pl.BlockSpec((1, Wo * Cout), lambda i: (0, 0)),
            ],
            out_specs=pl.BlockSpec((N * Ho, Wo * Cout), lambda i: (0, 0)),
        ),
        compiler_params=pltpu.CompilerParams(dimension_semantics=("arbitrary",)),
    )(xp, W_full, bias_tiled)

    # (N*Ho, Wo*Cout) -> (N, Ho, Wo, Cout) -> NCHW f32 to match nn.Conv2d output layout.
    return jnp.transpose(out.reshape(N, Ho, Wo, Cout), (0, 3, 1, 2)).astype(jnp.float32)


def _reference(x_nchw, weight_oihw, gamma, beta, running_mean, running_var,
               *, stride, leaky_slope, eps=1e-5, compute_dtype=jnp.float32):
    """Pure-JAX reference (lax conv). With compute_dtype=bf16 it matches the kernel's
    operand numerics (bf16 operands, BN scale folded into weights, f32 accumulation)."""
    KH = weight_oihw.shape[2]
    pad = KH // 2
    scale = gamma / jnp.sqrt(running_var + eps)
    bias = beta - running_mean * scale
    w = weight_oihw.astype(jnp.float32) * scale[:, None, None, None]
    y = jax.lax.conv_general_dilated(
        x_nchw.astype(compute_dtype), w.astype(compute_dtype),
        window_strides=(stride, stride),
        padding=((pad, pad), (pad, pad)),
        dimension_numbers=("NCHW", "OIHW", "NCHW"),
        preferred_element_type=jnp.float32,
    )
    y = y + bias[None, :, None, None]
    return jnp.where(y > 0, y, leaky_slope * y)


if __name__ == "__main__":
    # Module config: Conv2dBatchLeaky(in_channels=4, out_channels=8,
    #                                 kernel_size=3, stride=1, activation='leaky')
    N, Cin, H, W = 2, 4, 16, 16
    Cout, K, stride, leaky_slope = 8, 3, 1, 0.1

    key = jax.random.PRNGKey(0)
    kx, kw, kg, kb, km, kv = jax.random.split(key, 6)

    x = jax.random.normal(kx, (N, Cin, H, W), dtype=jnp.float32)
    weight = jax.random.normal(kw, (Cout, Cin, K, K), dtype=jnp.float32) * 0.1
    gamma = 1.0 + 0.1 * jax.random.normal(kg, (Cout,), dtype=jnp.float32)
    beta = 0.1 * jax.random.normal(kb, (Cout,), dtype=jnp.float32)
    running_mean = 0.1 * jax.random.normal(km, (Cout,), dtype=jnp.float32)
    running_var = jnp.abs(jax.random.normal(kv, (Cout,), dtype=jnp.float32)) + 0.5

    out = conv2d_batch_leaky(x, weight, gamma, beta, running_mean, running_var,
                             stride=stride, leaky_slope=leaky_slope)
    out = jax.block_until_ready(out)
    assert out.shape == (N, Cout, H, W)

    # Check against a reference with matching operand numerics (bf16 operands,
    # f32 accumulation); kernel additionally rounds its output to bf16.
    ref_bf16 = _reference(x, weight, gamma, beta, running_mean, running_var,
                          stride=stride, leaky_slope=leaky_slope,
                          compute_dtype=jnp.bfloat16)
    np.testing.assert_allclose(np.asarray(out), np.asarray(ref_bf16),
                               rtol=1e-2, atol=1e-2)

    # Sanity check against full-f32 semantics (tolerance covers bf16 rounding).
    ref_f32 = _reference(x, weight, gamma, beta, running_mean, running_var,
                         stride=stride, leaky_slope=leaky_slope,
                         compute_dtype=jnp.float32)
    np.testing.assert_allclose(np.asarray(out), np.asarray(ref_f32),
                               rtol=5e-2, atol=5e-2)

    print("KERNEL_OK")
</pallas_src>

<mosaic_0001>
module attributes {stable_mosaic.version = 11 : i64} {
  func.func @conv_bn_leaky_kernel(%arg0: i32, %arg1: memref<2x18x72xbf16, #tpu.memory_space<vmem>>, %arg2: memref<3x72x128xbf16, #tpu.memory_space<vmem>>, %arg3: memref<1x128xf32, #tpu.memory_space<vmem>>, %arg4: memref<32x128xbf16, #tpu.memory_space<vmem>>) attributes {dimension_semantics = [#tpu.dimension_semantics<arbitrary>], iteration_bounds = array<i64: 1>, scalar_prefetch = 0 : i64, scratch_operands = 0 : i64, tpu.core_type = #tpu.core_type<tc>, window_params = [{pipeline_mode = #tpu.pipeline_mode<synchronous>, transform_indices = @transform_0, window_bounds = array<i64: 2, 18, 72>}, {pipeline_mode = #tpu.pipeline_mode<synchronous>, transform_indices = @transform_1, window_bounds = array<i64: 3, 72, 128>}, {pipeline_mode = #tpu.pipeline_mode<synchronous>, transform_indices = @transform_2, window_bounds = array<i64: 1, 128>}, {pipeline_mode = #tpu.pipeline_mode<synchronous>, transform_indices = @transform_3, window_bounds = array<i64: 32, 128>}]} {
    %c0 = arith.constant 0 : index
    %c0_0 = arith.constant 0 : index
    %c0_1 = arith.constant 0 : index
    %0 = vector.load %arg1[%c0, %c0_0, %c0_1] : memref<2x18x72xbf16, #tpu.memory_space<vmem>>, vector<2x18x72xbf16>
    %1 = vector.extract_strided_slice %0 {offsets = [0, 0, 0], sizes = [1, 16, 72], strides = [1, 1, 1]} : vector<2x18x72xbf16> to vector<1x16x72xbf16>
    %2 = vector.shape_cast %1 : vector<1x16x72xbf16> to vector<16x72xbf16>
    %3 = vector.extract_strided_slice %0 {offsets = [1, 0, 0], sizes = [1, 16, 72], strides = [1, 1, 1]} : vector<2x18x72xbf16> to vector<1x16x72xbf16>
    %4 = vector.shape_cast %3 : vector<1x16x72xbf16> to vector<16x72xbf16>
    %5 = tpu.concatenate %2, %4 in 0 : vector<16x72xbf16>, vector<16x72xbf16> -> vector<32x72xbf16>
    %c0_2 = arith.constant 0 : index
    %c0_3 = arith.constant 0 : index
    %c0_4 = arith.constant 0 : index
    %6 = vector.load %arg2[%c0_2, %c0_3, %c0_4] : memref<3x72x128xbf16, #tpu.memory_space<vmem>>, vector<1x72x128xbf16>
    %7 = vector.shape_cast %6 : vector<1x72x128xbf16> to vector<72x128xbf16>
    %cst = arith.constant dense<0.000000e+00> : vector<32x128xf32>
    %8 = tpu.matmul %5, %7, %cst {dimension_numbers = #tpu.dot_dimension_numbers<[1], [0], [0], [1], [0, 0, 1, 1], [], []>} : vector<32x72xbf16>, vector<72x128xbf16>, vector<32x128xf32> -> vector<32x128xf32>
    %9 = vector.extract_strided_slice %0 {offsets = [0, 1, 0], sizes = [1, 16, 72], strides = [1, 1, 1]} : vector<2x18x72xbf16> to vector<1x16x72xbf16>
    %10 = vector.shape_cast %9 : vector<1x16x72xbf16> to vector<16x72xbf16>
    %11 = vector.extract_strided_slice %0 {offsets = [1, 1, 0], sizes = [1, 16, 72], strides = [1, 1, 1]} : vector<2x18x72xbf16> to vector<1x16x72xbf16>
    %12 = vector.shape_cast %11 : vector<1x16x72xbf16> to vector<16x72xbf16>
    %13 = tpu.concatenate %10, %12 in 0 : vector<16x72xbf16>, vector<16x72xbf16> -> vector<32x72xbf16>
    %c1 = arith.constant 1 : index
    %c0_5 = arith.constant 0 : index
    %c0_6 = arith.constant 0 : index
    %14 = vector.load %arg2[%c1, %c0_5, %c0_6] : memref<3x72x128xbf16, #tpu.memory_space<vmem>>, vector<1x72x128xbf16>
    %15 = vector.shape_cast %14 : vector<1x72x128xbf16> to vector<72x128xbf16>
    %cst_7 = arith.constant dense<0.000000e+00> : vector<32x128xf32>
    %16 = tpu.matmul %13, %15, %cst_7 {dimension_numbers = #tpu.dot_dimension_numbers<[1], [0], [0], [1], [0, 0, 1, 1], [], []>} : vector<32x72xbf16>, vector<72x128xbf16>, vector<32x128xf32> -> vector<32x128xf32>
    %17 = arith.addf %8, %16 : vector<32x128xf32>
    %18 = vector.extract_strided_slice %0 {offsets = [0, 2, 0], sizes = [1, 16, 72], strides = [1, 1, 1]} : vector<2x18x72xbf16> to vector<1x16x72xbf16>
    %19 = vector.shape_cast %18 : vector<1x16x72xbf16> to vector<16x72xbf16>
    %20 = vector.extract_strided_slice %0 {offsets = [1, 2, 0], sizes = [1, 16, 72], strides = [1, 1, 1]} : vector<2x18x72xbf16> to vector<1x16x72xbf16>
    %21 = vector.shape_cast %20 : vector<1x16x72xbf16> to vector<16x72xbf16>
    %22 = tpu.concatenate %19, %21 in 0 : vector<16x72xbf16>, vector<16x72xbf16> -> vector<32x72xbf16>
    %c2 = arith.constant 2 : index
    %c0_8 = arith.constant 0 : index
    %c0_9 = arith.constant 0 : index
    %23 = vector.load %arg2[%c2, %c0_8, %c0_9] : memref<3x72x128xbf16, #tpu.memory_space<vmem>>, vector<1x72x128xbf16>
    %24 = vector.shape_cast %23 : vector<1x72x128xbf16> to vector<72x128xbf16>
    %cst_10 = arith.constant dense<0.000000e+00> : vector<32x128xf32>
    %25 = tpu.matmul %22, %24, %cst_10 {dimension_numbers = #tpu.dot_dimension_numbers<[1], [0], [0], [1], [0, 0, 1, 1], [], []>} : vector<32x72xbf16>, vector<72x128xbf16>, vector<32x128xf32> -> vector<32x128xf32>
    %26 = arith.addf %17, %25 : vector<32x128xf32>
    %c0_11 = arith.constant 0 : index
    %c0_12 = arith.constant 0 : index
    %27 = vector.load %arg3[%c0_11, %c0_12] : memref<1x128xf32, #tpu.memory_space<vmem>>, vector<1x128xf32>
    %28 = vector.broadcast %27 : vector<1x128xf32> to vector<32x128xf32>
    %29 = arith.addf %26, %28 : vector<32x128xf32>
    %cst_13 = arith.constant 0.000000e+00 : f32
    %30 = vector.broadcast %cst_13 : f32 to vector<32x128xf32>
    %31 = arith.cmpf ogt, %29, %30 : vector<32x128xf32>
    %cst_14 = arith.constant 1.000000e-01 : f32
    %32 = vector.broadcast %cst_14 : f32 to vector<32x128xf32>
    %33 = arith.mulf %32, %29 : vector<32x128xf32>
    %34 = arith.select %31, %29, %33 : vector<32x128xi1>, vector<32x128xf32>
    %35 = arith.truncf %34 : vector<32x128xf32> to vector<32x128xbf16>
    %c0_15 = arith.constant 0 : index
    %c0_16 = arith.constant 0 : index
    %36 = vector.load %arg4[%c0_15, %c0_16] : memref<32x128xbf16, #tpu.memory_space<vmem>>, vector<32x128xbf16>
    tpu.vector_store %arg4[%c0_15, %c0_16], %35 {strides = array<i32>} : memref<32x128xbf16, #tpu.memory_space<vmem>>, vector<32x128xbf16>,
    return
  }
  func.func @transform_0(%arg0: i32) -> (i32, i32, i32) {
    %c0_i32 = arith.constant 0 : i32
    %c0_i32_0 = arith.constant 0 : i32
    %c0_i32_1 = arith.constant 0 : i32
    %c0_i32_2 = arith.constant 0 : i32
    return %c0_i32, %c0_i32_0, %c0_i32_1 : i32, i32, i32
  }
  func.func @transform_1(%arg0: i32) -> (i32, i32, i32) {
    %c0_i32 = arith.constant 0 : i32
    %c0_i32_0 = arith.constant 0 : i32
    %c0_i32_1 = arith.constant 0 : i32
    %c0_i32_2 = arith.constant 0 : i32
    return %c0_i32, %c0_i32_0, %c0_i32_1 : i32, i32, i32
  }
  func.func @transform_2(%arg0: i32) -> (i32, i32) {
    %c0_i32 = arith.constant 0 : i32
    %c0_i32_0 = arith.constant 0 : i32
    %c0_i32_1 = arith.constant 0 : i32
    return %c0_i32, %c0_i32_0 : i32, i32
  }
  func.func @transform_3(%arg0: i32) -> (i32, i32) {
    %c0_i32 = arith.constant 0 : i32
    %c0_i32_0 = arith.constant 0 : i32
    %c0_i32_1 = arith.constant 0 : i32
    return %c0_i32, %c0_i32_0 : i32, i32
  }
}

</mosaic_0001>

<llo_original>
// kernel: tpu_custom_call.1
$region0: #{tpu_custom_call.1}
  #allocation0 [shape = 'u32[]', space=smem, size = 0x4, offset = 0x4, fixed_abs, tag = 'smem constant byte address 0x4 - core index']
  #allocation1 [shape = 'u32[72,128]{1,0:T(1,128)}', space=vmem, size = 0x9000, scoped, tag = 'internal scratch']
  %s0 = inlined_call_operand.vmem [shape: bf16[2,18,72], index: 0, kind: input, shape index: {}]
  %s1 = inlined_call_operand.hbm [shape: bf16[3,72,128], index: 1, kind: input, shape index: {}]
  %s2 = inlined_call_operand.vmem [shape: f32[1,128], index: 2, kind: input, shape index: {}]
  %s3 = inlined_call_operand.hbm [shape: bf16[32,128], index: 3, kind: output, shape index: {}]
  %s4 = sld [smem:[#allocation0]]
  $region26: #{tpu_custom_call.1} parent=0
    _
  %s6 = ssub.s32 1, %s4
  %s7 = scalar_select 0, %s6, %s4
  $region1: #{tpu_custom_call.1} parent=0
    #allocation2 [shape = 'u8[55296]{0}', space=vmem, size = 0xd800, scoped, tag = 'input window, operand 1, single buffered']
    #allocation3 [shape = 's32[1]{0}', space=sflag, size = 0x4, scoped, tag = 'scoped memory for tpu_custom_call.1']
    #allocation4 [shape = 's32[1]{0}', space=sflag, size = 0x4, scoped, tag = 'scoped memory for tpu_custom_call.1']
    #allocation5 [shape = 'u8[8192]{0}', space=vmem, size = 0x2000, scoped, tag = 'output window, operand 0, single buffered']
    %8 = vsyncpa [#allocation3], 0
    %9 = vsyncpa [#allocation4], 0
    // Predicated region
    $region2: #{tpu_custom_call.1} parent=1 // pred_check
      _
    $region3: #{tpu_custom_call.1} parent=1 // pred_check_branch
      %11 = sbr.rel (0) target = $region5
    $region4: #{tpu_custom_call.1} parent=1 // pred_region
      _
    $region5: #{tpu_custom_call.1} parent=1 // pred_fallthru
      _
    // Predicated region
    $region6: #{tpu_custom_call.1} parent=1 // pred_check
      _
    $region7: #{tpu_custom_call.1} parent=1 // pred_check_branch
      %13 = sbr.rel (0) target = $region9
    $region8: #{tpu_custom_call.1} parent=1 // pred_region
      %15 = vsyncadd [#allocation3], 0
      %s16 = sshll.u32 %s1, 4
      %s17 = int_to_ptr.hbm [resolvable:$true] %s16
      %s18 = sshll.u32 [#allocation2], 4
      %s19 = int_to_ptr.vmem [resolvable:$true] %s18
      %24 = dma.hbm_to_vmem [thread:$0]  %s17, 1728, %s19, [#allocation3], 64, 64, 4
    $region9: #{tpu_custom_call.1} parent=1 // pred_fallthru
      _
    // Predicated region
    $region10: #{tpu_custom_call.1} parent=1 // pred_check
      _
    $region11: #{tpu_custom_call.1} parent=1 // pred_check_branch
      %26 = sbr.rel (0) target = $region13
    $region12: #{tpu_custom_call.1} parent=1 // pred_region
      _
    $region13: #{tpu_custom_call.1} parent=1 // pred_fallthru
      _
    // Predicated region
    $region14: #{tpu_custom_call.1} parent=1 // pred_check
      _
    $region15: #{tpu_custom_call.1} parent=1 // pred_check_branch
      %28 = sbr.rel (0) target = $region17
    $region16: #{tpu_custom_call.1} parent=1 // pred_region
      %30 = dma.done [#allocation3], 1728
    $region17: #{tpu_custom_call.1} parent=1 // pred_fallthru
      _
    %v32 = vld [vmem:[%s0] sm:$0xf]
    %v33 = vld [vmem:[%s0 + $0x4] sm:$0xf]
    %v34 = vld [vmem:[%s0 + $0x8] sm:$0x1]
    %v35 = vld [vmem:[%s0 + $0xc] sm:$0xf]
    %v36 = vld [vmem:[%s0 + $0x10] sm:$0xf]
    %v37 = vld [vmem:[%s0 + $0x14] sm:$0x1]
    %v40 = vunpack.c.l.b16 %v32
    %v41 = vunpack.c.l.b16 %v33
    %v42 = vpack.c.b16 %v41, %v40
    %v45 = vunpack.c.l.b16 %v35
    %v46 = vunpack.c.l.b16 %v36
    %v47 = vpack.c.b16 %v46, %v45
    %v48 = vld [vmem:[#allocation2] sm:$0xf]
    %v49 = vld [vmem:[#allocation2 + $0x4] sm:$0xf]
    %v50 = vld [vmem:[#allocation2 + $0x8] sm:$0xf]
    %v51 = vld [vmem:[#allocation2 + $0xc] sm:$0xf]
    %v52 = vld [vmem:[#allocation2 + $0x10] sm:$0xf]
    %v53 = vld [vmem:[#allocation2 + $0x14] sm:$0xf]
    %v54 = vld [vmem:[#allocation2 + $0x18] sm:$0xf]
    %v55 = vld [vmem:[#allocation2 + $0x1c] sm:$0xf]
    %v56 = vld [vmem:[#allocation2 + $0x20] sm:$0xf]
    %v58 = vunpack.c.l.b16 %v34
    %v59 = vpack.c.b16 %v58, %v58
    %vm60 = vsmask.f32 7424
    %v62 = vshrl.u32 %v42, 16
    %v64 = vshll.u32 %v42, 16
    %v66 = vrot.slane %v64, 1
    %v67 = vor.u32 %v62, %v66
    %v69 = vshll.u32 %v59, 16
    %v71 = vrot.slane %v69, 1
    %v72 = vsel %vm60, %v67, %v71
    %v74 = vunpack.c.l.b16 %v37
    %v75 = vpack.c.b16 %v74, %v74
    %v77 = vshrl.u32 %v47, 16
    %v79 = vshll.u32 %v47, 16
    %v81 = vrot.slane %v79, 1
    %v82 = vor.u32 %v77, %v81
    %v84 = vshll.u32 %v75, 16
    %v86 = vrot.slane %v84, 1
    %v87 = vsel %vm60, %v82, %v86
    %s88 = scalar_lea.vmem [#allocation2], 36
    %v89 = vld [vmem:[%s88] sm:$0xf]
    %v90 = vld [vmem:[%s88 + $0x4] sm:$0xf]
    %v91 = vld [vmem:[%s88 + $0x8] sm:$0xf]
    %v92 = vld [vmem:[%s88 + $0xc] sm:$0xf]
    %v93 = vld [vmem:[%s88 + $0x10] sm:$0xf]
    %v94 = vld [vmem:[%s88 + $0x14] sm:$0xf]
    %v95 = vld [vmem:[%s88 + $0x18] sm:$0xf]
    %v96 = vld [vmem:[%s88 + $0x1c] sm:$0xf]
    %v97 = vld [vmem:[%s88 + $0x20] sm:$0xf]
    %v107 = vunpack.c.l.b16 %v89
    %v108 = vunpack.c.l.b16 %v90
    %v109 = vunpack.c.l.b16 %v91
    %v110 = vunpack.c.l.b16 %v92
    %v111 = vunpack.c.l.b16 %v93
    %v112 = vunpack.c.l.b16 %v94
    %v113 = vunpack.c.l.b16 %v95
    %v114 = vunpack.c.l.b16 %v96
    %v115 = vunpack.c.l.b16 %v97
    %v116 = vpack.c.b16 %v108, %v107
    %v117 = vpack.c.b16 %v110, %v109
    %v118 = vpack.c.b16 %v112, %v111
    %v119 = vpack.c.b16 %v114, %v113
    %v120 = vpack.c.b16 %v115, %v115
    %vm125 = vcmask 588800
    %v127 = vsel %vm125, %v72, 0
    %v130 = vsel %vm125, %v87, 0
    %vm132 = vcmask 1043456
    %v134 = vsel %vm132, %v120, 0
    %136 = vmatpush.bf16.msra.mxu0 0
    %137 = vmatpush.bf16.msra.mxu0 0
    %138 = vmatpush.bf16.msra.mxu0 0
    %139 = vmatpush.bf16.msra.mxu0 %v134
    %140 = vmatpush.bf16.msra.mxu0 %v119
    %141 = vmatpush.bf16.msra.mxu0 %v118
    %142 = vmatpush.bf16.msra.mxu0 %v117
    %143 = vmatpush.bf16.msra.mxu0 %v116
    %144 = vmatmul.bf16.gmra.mxu0 %v127
    %v145 = vpop.f32.mrf.mxu0
    %v146 = vadd.f32 0.0, %v145
    %v147 = vpop.f32.mrf.mxu0
    %v148 = vadd.f32 0.0, %v147
    %149 = vmatmul.bf16.gmra.mxu0 %v130
    %v150 = vpop.f32.mrf.mxu0
    %v151 = vadd.f32 0.0, %v150
    %v152 = vpop.f32.mrf.mxu0
    %v153 = vadd.f32 0.0, %v152
    %154 = vdwg.mxu0
    %v164 = vunpack.c.l.b16 %v48
    %v165 = vunpack.c.l.b16 %v49
    %v166 = vunpack.c.l.b16 %v50
    %v167 = vunpack.c.l.b16 %v51
    %v168 = vunpack.c.l.b16 %v52
    %v169 = vunpack.c.l.b16 %v53
    %v170 = vunpack.c.l.b16 %v54
    %v171 = vunpack.c.l.b16 %v55
    %v172 = vunpack.c.l.b16 %v56
    %v173 = vpack.c.b16 %v165, %v164
    %v174 = vpack.c.b16 %v167, %v166
    %v175 = vpack.c.b16 %v169, %v168
    %v176 = vpack.c.b16 %v171, %v170
    %v177 = vpack.c.b16 %v172, %v172
    %v182 = vsel %vm125, %v42, 0
    %v184 = vsel %vm125, %v47, 0
    %v187 = vsel %vm132, %v177, 0
    %189 = vmatpush.bf16.msra.mxu0 0
    %190 = vmatpush.bf16.msra.mxu0 0
    %191 = vmatpush.bf16.msra.mxu0 0
    %192 = vmatpush.bf16.msra.mxu0 %v187
    %193 = vmatpush.bf16.msra.mxu0 %v176
    %194 = vmatpush.bf16.msra.mxu0 %v175
    %195 = vmatpush.bf16.msra.mxu0 %v174
    %196 = vmatpush.bf16.msra.mxu0 %v173
    %197 = vmatmul.bf16.gmra.mxu0 %v182
    %v198 = vpop.f32.mrf.mxu0
    %v199 = vadd.f32 %v146, %v198
    %v200 = vpop.f32.mrf.mxu0
    %v201 = vadd.f32 %v148, %v200
    %202 = vmatmul.bf16.gmra.mxu0 %v184
    %v203 = vpop.f32.mrf.mxu0
    %v204 = vadd.f32 %v151, %v203
    %v205 = vpop.f32.mrf.mxu0
    %v206 = vadd.f32 %v153, %v205
    %207 = vdwg.mxu0
    %vm208 = vcmask 1046528
    %v209 = vrot.slane %v42, 1
    %v210 = vrot.slane %v59, 1
    %v211 = vsel %vm208, %v209, %v210
    %v212 = vrot.slane %v47, 1
    %v213 = vrot.slane %v75, 1
    %v214 = vsel %vm208, %v212, %v213
    %s215 = scalar_lea.vmem [#allocation2], 72
    %v216 = vld [vmem:[%s215] sm:$0xf]
    %v217 = vld [vmem:[%s215 + $0x4] sm:$0xf]
    %v218 = vld [vmem:[%s215 + $0x8] sm:$0xf]
    %v219 = vld [vmem:[%s215 + $0xc] sm:$0xf]
    %v220 = vld [vmem:[%s215 + $0x10] sm:$0xf]
    %v221 = vld [vmem:[%s215 + $0x14] sm:$0xf]
    %v222 = vld [vmem:[%s215 + $0x18] sm:$0xf]
    %v223 = vld [vmem:[%s215 + $0x1c] sm:$0xf]
    %v224 = vld [vmem:[%s215 + $0x20] sm:$0xf]
    %v234 = vunpack.c.l.b16 %v216
    %v235 = vunpack.c.l.b16 %v217
    %v236 = vunpack.c.l.b16 %v218
    %v237 = vunpack.c.l.b16 %v219
    %v238 = vunpack.c.l.b16 %v220
    %v239 = vunpack.c.l.b16 %v221
    %v240 = vunpack.c.l.b16 %v222
    %v241 = vunpack.c.l.b16 %v223
    %v242 = vunpack.c.l.b16 %v224
    %v243 = vpack.c.b16 %v235, %v234
    %v244 = vpack.c.b16 %v237, %v236
    %v245 = vpack.c.b16 %v239, %v238
    %v246 = vpack.c.b16 %v241, %v240
    %v247 = vpack.c.b16 %v242, %v242
    %v253 = vsel %vm125, %v211, 0
    %v256 = vsel %vm125, %v214, 0
    %v259 = vsel %vm132, %v247, 0
    %261 = vmatpush.bf16.msra.mxu0 0
    %262 = vmatpush.bf16.msra.mxu0 0
    %263 = vmatpush.bf16.msra.mxu0 0
    %264 = vmatpush.bf16.msra.mxu0 %v259
    %265 = vmatpush.bf16.msra.mxu0 %v246
    %266 = vmatpush.bf16.msra.mxu0 %v245
    %267 = vmatpush.bf16.msra.mxu0 %v244
    %268 = vmatpush.bf16.msra.mxu0 %v243
    %269 = vmatmul.bf16.gmra.mxu0 %v253
    %v270 = vpop.f32.mrf.mxu0
    %v271 = vadd.f32 0.0, %v270
    %v272 = vpop.f32.mrf.mxu0
    %v273 = vadd.f32 0.0, %v272
    %274 = vmatmul.bf16.gmra.mxu0 %v256
    %v275 = vpop.f32.mrf.mxu0
    %v276 = vadd.f32 0.0, %v275
    %v277 = vpop.f32.mrf.mxu0
    %v278 = vadd.f32 0.0, %v277
    %279 = vdwg.mxu0
    %v280 = vadd.f32 %v199, %v271
    %v281 = vadd.f32 %v201, %v273
    %v282 = vadd.f32 %v204, %v276
    %v283 = vadd.f32 %v206, %v278
    %v284 = vld [vmem:[%s2] sm:$0x1]
    %v286 = vperm.slane %v284, 0
    %v288 = vadd.f32 %v280, %v286
    %v289 = vadd.f32 %v281, %v286
    %v290 = vadd.f32 %v282, %v286
    %v291 = vadd.f32 %v283, %v286
    %vm292 = vcmp.gt.f32.partialorder %v288, 0.0
    %vm293 = vcmp.gt.f32.partialorder %v289, 0.0
    %vm294 = vcmp.gt.f32.partialorder %v290, 0.0
    %vm295 = vcmp.gt.f32.partialorder %v291, 0.0
    %v296 = vmul.f32 %v288, 0.1
    %v297 = vmul.f32 %v289, 0.1
    %v298 = vmul.f32 %v290, 0.1
    %v299 = vmul.f32 %v291, 0.1
    %v300 = vsel %vm292, %v288, %v296
    %v301 = vsel %vm293, %v289, %v297
    %v302 = vsel %vm294, %v290, %v298
    %v303 = vsel %vm295, %v291, %v299
    %v304 = vpack.c.bf16 %v300, %v300
    %v305 = vpack.c.bf16 %v301, %v301
    %v306 = vpack.c.bf16 %v302, %v302
    %v307 = vpack.c.bf16 %v303, %v303
    %308 = vst [vmem:[#allocation5] sm:$0xf] %v304
    %309 = vst [vmem:[#allocation5 + $0x4] sm:$0xf] %v305
    %310 = vst [vmem:[#allocation5 + $0x8] sm:$0xf] %v306
    %311 = vst [vmem:[#allocation5 + $0xc] sm:$0xf] %v307
    // Predicated region
    $region18: #{tpu_custom_call.1} parent=1 // pred_check
      _
    $region19: #{tpu_custom_call.1} parent=1 // pred_check_branch
      %313 = sbr.rel (0) target = $region21
    $region20: #{tpu_custom_call.1} parent=1 // pred_region
      %315 = vsyncadd [#allocation4], 0
      %s316 = sshll.u32 [#allocation5], 4
      %s317 = int_to_ptr.vmem [resolvable:$true] %s316
      %s318 = sshll.u32 %s3, 4
      %s319 = int_to_ptr.hbm [resolvable:$true] %s318
      %324 = dma.vmem_to_hbm [thread:$0]  %s317, 256, %s319, [#allocation4], 64, 64, 4
    $region21: #{tpu_custom_call.1} parent=1 // pred_fallthru
      _
    // Predicated region
    $region22: #{tpu_custom_call.1} parent=1 // pred_check
      _
    $region23: #{tpu_custom_call.1} parent=1 // pred_check_branch
      %326 = sbr.rel (0) target = $region25
    $region24: #{tpu_custom_call.1} parent=1 // pred_region
      %328 = dma.done [#allocation4], 256
    $region25: #{tpu_custom_call.1} parent=1 // pred_fallthru
      _
    %329 = vsyncpa [#allocation3], 1
    %330 = vsyncpa [#allocation4], 1

</llo_original>
